<compile_context>
chip_gen: v5e
topology: v5e:2x2
jax: 0.10.0
libtpu: 0.0.40
codegen_flags: <defaults>
</compile_context>

<pallas_src>
import functools

import numpy as np
import jax
import jax.numpy as jnp
from jax.experimental import pallas as pl
from jax.experimental.pallas import tpu as pltpu

LANES = 128
MAX_BLOCK_ROWS = 2048  # 2048 x 128 f32 = 1 MiB per input block; 4 MiB double-buffered.


def _static_pow(x, e):
    """x ** e specialized at trace time. Returns None when the factor is exactly 1."""
    e = float(e)
    if e == 0.0:
        return None           # pow(x, 0) == 1 for every x (matches torch.pow semantics)
    if e == 1.0:
        return x
    if e == int(e) and 0 < int(e) <= 16:
        n = int(e)
        result = None
        base = x
        while n:
            if n & 1:
                result = base if result is None else result * base
            n >>= 1
            if n:
                base = base * base
        return result
    return jnp.power(x, e)


# ----------------------------------------------------------------------------------
# CenterLoss kernel: per-block lane-dense partial sums of [pos_count, pos+neg loss].
# ----------------------------------------------------------------------------------
def _center_loss_kernel(pred_ref, gt_ref, cnt_ref, loss_ref, *,
                        alpha, beta, eps, total_rows, block_rows, need_row_mask):
    p = pred_ref[...].astype(jnp.float32)
    g = gt_ref[...].astype(jnp.float32)

    pos = g == 1.0
    neg = g < 1.0

    if need_row_mask:
        # Only the tail grid block overhangs the array; mask its out-of-bounds rows.
        i = pl.program_id(0)
        row = jax.lax.broadcasted_iota(jnp.int32, p.shape, 0) + i * block_rows
        valid = row < total_rows
        pos = jnp.logical_and(pos, valid)
        neg = jnp.logical_and(neg, valid)

    # pos term: log(p + eps) * (1 - p)^alpha
    pos_term = jnp.log(p + eps)
    f = _static_pow(1.0 - p, alpha)
    if f is not None:
        pos_term = pos_term * f

    # neg term: log(1 - p + eps) * p^alpha * (1 - g)^beta
    neg_term = jnp.log(1.0 - p + eps)
    f = _static_pow(p, alpha)
    if f is not None:
        neg_term = neg_term * f
    f = _static_pow(1.0 - g, beta)
    if f is not None:
        neg_term = neg_term * f

    term = jnp.where(pos, pos_term, jnp.where(neg, neg_term, 0.0))
    cnt = jnp.where(pos, 1.0, 0.0)

    # Per-block lane-dense partials (sublane reduce once per big block).
    cnt_ref[...] = jnp.sum(cnt, axis=0, keepdims=True)     # (1, 128)
    loss_ref[...] = jnp.sum(term, axis=0, keepdims=True)   # (1, 128)


def center_loss_pallas(preds_nchw, gt_nhwc, alpha=0.0, beta=4.0, eps=1e-8):
    B, C, H, W = preds_nchw.shape
    if C == 1:
        # NCHW with C == 1 flattens in the same (b, h, w) order as NHWC: no transpose copy.
        pred_flat = preds_nchw.reshape(-1)
    else:
        pred_flat = jnp.transpose(preds_nchw, (0, 2, 3, 1)).reshape(-1)
    gt_flat = gt_nhwc.reshape(-1)
    M = int(pred_flat.shape[0])

    pred_flat = pred_flat.astype(jnp.float32)
    gt_flat = gt_flat.astype(jnp.float32)

    # Minimal lane padding only (to a multiple of 128).  gt pad value 2.0 is neither
    # `== 1` (pos) nor `< 1` (neg), so padded lanes contribute exactly 0.
    Ml = ((M + LANES - 1) // LANES) * LANES
    if Ml != M:
        pred_flat = jnp.pad(pred_flat, (0, Ml - M), constant_values=0.0)
        gt_flat = jnp.pad(gt_flat, (0, Ml - M), constant_values=2.0)

    rows = Ml // LANES
    block_rows = min(MAX_BLOCK_ROWS, rows)
    nb = (rows + block_rows - 1) // block_rows
    need_row_mask = (rows % block_rows) != 0

    pred2d = pred_flat.reshape(rows, LANES)
    gt2d = gt_flat.reshape(rows, LANES)

    cnt_p, loss_p = pl.pallas_call(
        functools.partial(
            _center_loss_kernel,
            alpha=float(alpha), beta=float(beta), eps=float(eps),
            total_rows=rows, block_rows=block_rows, need_row_mask=need_row_mask),
        out_shape=(jax.ShapeDtypeStruct((nb, LANES), jnp.float32),
                   jax.ShapeDtypeStruct((nb, LANES), jnp.float32)),
        grid=(nb,),
        in_specs=[
            pl.BlockSpec((block_rows, LANES), lambda i: (i, 0)),
            pl.BlockSpec((block_rows, LANES), lambda i: (i, 0)),
        ],
        out_specs=(
            pl.BlockSpec((1, LANES), lambda i: (i, 0)),
            pl.BlockSpec((1, LANES), lambda i: (i, 0)),
        ),
        compiler_params=pltpu.CompilerParams(dimension_semantics=("parallel",)),
    )(pred2d, gt2d)

    num_pos = jnp.sum(cnt_p)
    total = jnp.sum(loss_p)  # pos_sum + neg_sum (pos_sum == 0 when num_pos == 0)
    loss = jnp.where(num_pos == 0.0, -total, -total / jnp.maximum(num_pos, 1.0))
    return loss


# ----------------------------------------------------------------------------------
# Size loss: tiny (K, 2) tensor -> fused XLA per perf review (a pallas_call here is
# pure launch overhead).
# ----------------------------------------------------------------------------------
def size_loss_jax(true_size, pred_size, eps=1e-8):
    per = jnp.abs(true_size - pred_size) / (true_size + eps)
    return per.sum(axis=-1).mean()


# ----------------------------------------------------------------------------------
# PaPsLoss wrapper (forward semantics of the PyTorch module).
# ----------------------------------------------------------------------------------
class PaPsLossJAX:
    def __init__(self, l_center=1, l_size=1, l_shape=1, l_class=1, alpha=0, beta=4,
                 gamma=0, eps=1e-8, void_label=None, binary_threshold=0.4):
        self.l_center = l_center
        self.l_size = l_size
        self.l_shape = l_shape
        self.l_class = l_class
        self.alpha = alpha
        self.beta = beta
        self.gamma = gamma
        self.eps = eps
        self.binary_threshold = binary_threshold
        self.value = (0, 0, 0, 0, 0)

    def __call__(self, predictions, target, heatmap_only=False):
        # target split along last dim with sizes (1, 1, 1, 2, 1, 1)
        target_heatmap = target[..., 0:1]
        # true_instances = target[..., 1:2]   # only used by the shape loss (see TODO)
        # zones          = target[..., 2:3]
        size = target[..., 3:5]
        # sem_obj        = target[..., 5:6]   # only used by the class loss (see TODO)
        # sem_pix        = target[..., 6:7]

        loss_center = 0.0
        loss_size = 0.0
        loss_shape = 0.0
        loss_class = 0.0

        if self.l_center != 0:
            loss_center = center_loss_pallas(
                predictions["heatmap"], target_heatmap, self.alpha, self.beta, self.eps
            )

        if not heatmap_only and predictions["size"].shape[0] != 0:
            if self.l_size != 0:
                # On-device gather: K is static (shape of predictions["size"]), so
                # jnp.nonzero(size=K) keeps this fully asynchronous (no host sync).
                K = int(predictions["size"].shape[0])
                flat_mask = predictions["center_mask"].reshape(-1)
                idxs = jnp.nonzero(flat_mask, size=K, fill_value=0)[0]   # row-major order
                true_size = size.reshape(-1, size.shape[-1])[idxs]       # (K, 2)
                loss_size = size_loss_jax(true_size, predictions["size"], self.eps)
            # TODO(synk): loss_class needs FocalLoss, whose definition is not provided in the module source.
            # TODO(synk): loss_shape needs data-dependent per-instance matching (python dict center_mapping,
            #             dynamic box crops, per-instance IoUs) -- no clean static-shape Pallas equivalent.

        loss = (self.l_center * loss_center + self.l_size * loss_size
                + self.l_shape * loss_shape + self.l_class * loss_class)
        # Keep device scalars (no float()/host sync inside the forward).
        self.value = (loss_center, loss_size, loss_shape, loss_class)
        return loss


# ----------------------------------------------------------------------------------
# Pure-numpy references (for correctness check only).
# ----------------------------------------------------------------------------------
def _center_loss_ref(pred_nchw, gt_nhwc, alpha, beta, eps):
    C = pred_nchw.shape[1]
    p = np.transpose(pred_nchw, (0, 2, 3, 1)).reshape(-1, C)
    g = gt_nhwc.reshape(-1, C)
    pos = g == 1
    neg = g < 1
    num_pos = pos.astype(np.float32).sum()
    pos_loss = (np.log(p[pos] + eps) * np.power(1.0 - p[pos], alpha)).sum()
    neg_loss = (np.log(1.0 - p[neg] + eps) * np.power(p[neg], alpha)
                * np.power(1.0 - g[neg], beta)).sum()
    if p[pos].size == 0:
        return -neg_loss
    return -(pos_loss + neg_loss) / num_pos


def _size_loss_ref(true_size, pred_size, eps):
    v = np.abs(true_size - pred_size) / (true_size + eps)
    return v.sum(axis=-1).mean()


if __name__ == "__main__":
    key = jax.random.PRNGKey(0)
    B, C, H, W = 2, 1, 16, 16

    k1, k2, k3, k4 = jax.random.split(key, 4)

    # Predicted heatmap in (0, 1), NCHW.
    heatmap = jax.nn.sigmoid(jax.random.normal(k1, (B, C, H, W), dtype=jnp.float32))

    # Ground-truth heatmap in [0, 1) with a few exact 1.0 peaks (the centers).
    # (np.array makes a writable copy -- np.asarray on a jax array is read-only.)
    gt_heat_np = np.array(jax.random.uniform(k2, (B, H, W, 1), dtype=jnp.float32, maxval=0.95))
    center_mask_np = np.zeros((B, H, W), dtype=bool)
    centers = [(0, 3, 4), (0, 10, 12), (0, 7, 7), (1, 2, 2), (1, 8, 11), (1, 14, 5)]
    for (b, y, x) in centers:
        center_mask_np[b, y, x] = True
    gt_heat_np[center_mask_np] = 1.0
    gt_heat = jnp.asarray(gt_heat_np)

    # Build full target tensor (B, H, W, 7): heatmap | instances | zones | size(2) | sem_obj | sem_pix
    instances = jnp.asarray(
        np.random.RandomState(0).randint(0, 4, size=(B, H, W, 1)).astype(np.float32))
    zones = jnp.asarray(
        np.random.RandomState(1).randint(0, 4, size=(B, H, W, 1)).astype(np.float32))
    gt_size = 1.0 + 10.0 * jax.random.uniform(k3, (B, H, W, 2), dtype=jnp.float32)
    sem_obj = jnp.asarray(
        np.random.RandomState(2).randint(0, 3, size=(B, H, W, 1)).astype(np.float32))
    sem_pix = jnp.asarray(
        np.random.RandomState(3).randint(0, 3, size=(B, H, W, 1)).astype(np.float32))
    target = jnp.concatenate([gt_heat, instances, zones, gt_size, sem_obj, sem_pix], axis=-1)

    # Predicted sizes at the K detected centers (order = row-major nonzero order).
    K = int(center_mask_np.sum())
    pred_size = 1.0 + 10.0 * jax.random.uniform(k4, (K, 2), dtype=jnp.float32)

    predictions = {
        "heatmap": heatmap,
        "center_mask": jnp.asarray(center_mask_np),
        "size": pred_size,
    }

    loss_fn = PaPsLossJAX()
    loss = loss_fn(predictions, target)
    loss = jax.block_until_ready(loss)

    # Reference check (numpy).
    ref_center = _center_loss_ref(np.asarray(heatmap), np.asarray(gt_heat),
                                  loss_fn.alpha, loss_fn.beta, loss_fn.eps)
    ref_size = _size_loss_ref(np.asarray(gt_size)[center_mask_np], np.asarray(pred_size),
                              loss_fn.eps)
    ref_total = loss_fn.l_center * ref_center + loss_fn.l_size * ref_size
    np.testing.assert_allclose(float(loss), float(ref_total), rtol=2e-3, atol=1e-4)

    print("KERNEL_OK")
</pallas_src>

<mosaic_0001>
module attributes {stable_mosaic.version = 11 : i64} {
  func.func @_center_loss_kernel(%arg0: i32, %arg1: memref<4x128xf32, #tpu.memory_space<vmem>>, %arg2: memref<4x128xf32, #tpu.memory_space<vmem>>, %arg3: memref<1x128xf32, #tpu.memory_space<vmem>>, %arg4: memref<1x128xf32, #tpu.memory_space<vmem>>) attributes {dimension_semantics = [#tpu.dimension_semantics<parallel>], iteration_bounds = array<i64: 1>, scalar_prefetch = 0 : i64, scratch_operands = 0 : i64, tpu.core_type = #tpu.core_type<tc>, window_params = [{transform_indices = @transform_0, window_bounds = array<i64: 4, 128>}, {transform_indices = @transform_1, window_bounds = array<i64: 4, 128>}, {transform_indices = @transform_2, window_bounds = array<i64: 1, 128>}, {transform_indices = @transform_3, window_bounds = array<i64: 1, 128>}]} {
    %c0 = arith.constant 0 : index
    %c0_0 = arith.constant 0 : index
    %0 = vector.load %arg1[%c0, %c0_0] : memref<4x128xf32, #tpu.memory_space<vmem>>, vector<4x128xf32>
    %c0_1 = arith.constant 0 : index
    %c0_2 = arith.constant 0 : index
    %1 = vector.load %arg2[%c0_1, %c0_2] : memref<4x128xf32, #tpu.memory_space<vmem>>, vector<4x128xf32>
    %cst = arith.constant 1.000000e+00 : f32
    %2 = vector.broadcast %cst : f32 to vector<4x128xf32>
    %3 = arith.cmpf oeq, %1, %2 : vector<4x128xf32>
    %cst_3 = arith.constant 1.000000e+00 : f32
    %4 = vector.broadcast %cst_3 : f32 to vector<4x128xf32>
    %5 = arith.cmpf olt, %1, %4 : vector<4x128xf32>
    %cst_4 = arith.constant 9.99999993E-9 : f32
    %6 = vector.broadcast %cst_4 : f32 to vector<4x128xf32>
    %7 = arith.addf %0, %6 : vector<4x128xf32>
    %8 = math.log %7 : vector<4x128xf32>
    %cst_5 = arith.constant 1.000000e+00 : f32
    %9 = vector.broadcast %cst_5 : f32 to vector<4x128xf32>
    %10 = arith.subf %9, %0 : vector<4x128xf32>
    %cst_6 = arith.constant 9.99999993E-9 : f32
    %11 = vector.broadcast %cst_6 : f32 to vector<4x128xf32>
    %12 = arith.addf %10, %11 : vector<4x128xf32>
    %13 = math.log %12 : vector<4x128xf32>
    %cst_7 = arith.constant 1.000000e+00 : f32
    %14 = vector.broadcast %cst_7 : f32 to vector<4x128xf32>
    %15 = arith.subf %14, %1 : vector<4x128xf32>
    %16 = arith.mulf %15, %15 : vector<4x128xf32>
    %17 = arith.mulf %16, %16 : vector<4x128xf32>
    %18 = arith.mulf %13, %17 : vector<4x128xf32>
    %cst_8 = arith.constant 0.000000e+00 : f32
    %19 = vector.broadcast %cst_8 : f32 to vector<4x128xf32>
    %20 = arith.select %5, %18, %19 : vector<4x128xi1>, vector<4x128xf32>
    %21 = arith.select %3, %8, %20 : vector<4x128xi1>, vector<4x128xf32>
    %cst_9 = arith.constant 1.000000e+00 : f32
    %cst_10 = arith.constant 0.000000e+00 : f32
    %22 = vector.broadcast %cst_9 : f32 to vector<4x128xf32>
    %23 = vector.broadcast %cst_10 : f32 to vector<4x128xf32>
    %24 = arith.select %3, %22, %23 : vector<4x128xi1>, vector<4x128xf32>
    %cst_11 = arith.constant dense<0.000000e+00> : vector<128xf32>
    %25 = vector.multi_reduction <add>, %24, %cst_11 [0] : vector<4x128xf32> to vector<128xf32>
    %26 = vector.shape_cast %25 : vector<128xf32> to vector<1x128xf32>
    %c0_12 = arith.constant 0 : index
    %c0_13 = arith.constant 0 : index
    %27 = vector.load %arg3[%c0_12, %c0_13] : memref<1x128xf32, #tpu.memory_space<vmem>>, vector<1x128xf32>
    tpu.vector_store %arg3[%c0_12, %c0_13], %26 {strides = array<i32>} : memref<1x128xf32, #tpu.memory_space<vmem>>, vector<1x128xf32>,
    %cst_14 = arith.constant dense<0.000000e+00> : vector<128xf32>
    %28 = vector.multi_reduction <add>, %21, %cst_14 [0] : vector<4x128xf32> to vector<128xf32>
    %29 = vector.shape_cast %28 : vector<128xf32> to vector<1x128xf32>
    %c0_15 = arith.constant 0 : index
    %c0_16 = arith.constant 0 : index
    %30 = vector.load %arg4[%c0_15, %c0_16] : memref<1x128xf32, #tpu.memory_space<vmem>>, vector<1x128xf32>
    tpu.vector_store %arg4[%c0_15, %c0_16], %29 {strides = array<i32>} : memref<1x128xf32, #tpu.memory_space<vmem>>, vector<1x128xf32>,
    return
  }
  func.func @transform_0(%arg0: i32) -> (i32, i32) {
    %c0_i32 = arith.constant 0 : i32
    %c0_i32_0 = arith.constant 0 : i32
    return %arg0, %c0_i32 : i32, i32
  }
  func.func @transform_1(%arg0: i32) -> (i32, i32) {
    %c0_i32 = arith.constant 0 : i32
    %c0_i32_0 = arith.constant 0 : i32
    return %arg0, %c0_i32 : i32, i32
  }
  func.func @transform_2(%arg0: i32) -> (i32, i32) {
    %c0_i32 = arith.constant 0 : i32
    %c0_i32_0 = arith.constant 0 : i32
    return %arg0, %c0_i32 : i32, i32
  }
  func.func @transform_3(%arg0: i32) -> (i32, i32) {
    %c0_i32 = arith.constant 0 : i32
    %c0_i32_0 = arith.constant 0 : i32
    return %arg0, %c0_i32 : i32, i32
  }
}

</mosaic_0001>

<llo_original>
// kernel: tpu_custom_call.1
$region0: #{tpu_custom_call.1}
  #allocation0 [shape = 'u32[]', space=smem, size = 0x4, offset = 0x4, fixed_abs, tag = 'smem constant byte address 0x4 - core index']
  #allocation1 [shape = 'u32[72,128]{1,0:T(1,128)}', space=vmem, size = 0x9000, scoped, tag = 'internal scratch']
  %s0 = inlined_call_operand.hbm [shape: f32[4,128], index: 0, kind: input, shape index: {}]
  %s1 = inlined_call_operand.hbm [shape: f32[4,128], index: 1, kind: input, shape index: {}]
  %s2 = inlined_call_operand.hbm [shape: f32[1,128], index: 2, kind: output, shape index: {0}]
  %s3 = inlined_call_operand.hbm [shape: f32[1,128], index: 3, kind: output, shape index: {1}]
  %4 = xla_tuple %s2, %s3
  %s5 = sld [smem:[#allocation0]]
  $region34: #{tpu_custom_call.1} parent=0
    _
  %s7 = ssub.s32 1, %s5
  %s8 = scalar_select 0, %s7, %s5
  $region1: #{tpu_custom_call.1} parent=0
    #allocation2 [shape = 'u8[2048]{0}', space=vmem, size = 0x800, scoped, tag = 'input window, operand 0, single buffered']
    #allocation3 [shape = 's32[1]{0}', space=sflag, size = 0x4, scoped, tag = 'scoped memory for tpu_custom_call.1']
    #allocation4 [shape = 's32[1]{0}', space=sflag, size = 0x4, scoped, tag = 'scoped memory for tpu_custom_call.1']
    #allocation5 [shape = 'u8[2048]{0}', space=vmem, size = 0x800, scoped, tag = 'input window, operand 1, single buffered']
    #allocation6 [shape = 's32[1]{0}', space=sflag, size = 0x4, scoped, tag = 'scoped memory for tpu_custom_call.1']
    #allocation7 [shape = 'u8[512]{0}', space=vmem, size = 0x400, scoped, tag = 'output window, operand 0, single buffered']
    #allocation8 [shape = 'u8[512]{0}', space=vmem, size = 0x400, scoped, tag = 'output window, operand 1, single buffered']
    #allocation9 [shape = 's32[1]{0}', space=sflag, size = 0x4, scoped, tag = 'scoped memory for tpu_custom_call.1']
    %9 = vsyncpa [#allocation3], 0
    %10 = vsyncpa [#allocation6], 0
    %11 = vsyncpa [#allocation4], 0
    %12 = vsyncpa [#allocation9], 0
    // Predicated region
    $region2: #{tpu_custom_call.1} parent=1 // pred_check
      _
    $region3: #{tpu_custom_call.1} parent=1 // pred_check_branch
      %14 = sbr.rel (0) target = $region5
    $region4: #{tpu_custom_call.1} parent=1 // pred_region
      %16 = vsyncadd [#allocation3], 0
      %s18 = sshll.u32 %s0, 4
      %s19 = int_to_ptr.hbm [resolvable:$true] %s18
      %s20 = sshll.u32 [#allocation2], 4
      %s21 = int_to_ptr.vmem [resolvable:$true] %s20
      %23 = dma.hbm_to_vmem [thread:$0]  %s19, 64, %s21, [#allocation3]
    $region5: #{tpu_custom_call.1} parent=1 // pred_fallthru
      _
    // Predicated region
    $region6: #{tpu_custom_call.1} parent=1 // pred_check
      _
    $region7: #{tpu_custom_call.1} parent=1 // pred_check_branch
      %25 = sbr.rel (0) target = $region9
    $region8: #{tpu_custom_call.1} parent=1 // pred_region
      %27 = vsyncadd [#allocation6], 0
      %s29 = sshll.u32 %s1, 4
      %s30 = int_to_ptr.hbm [resolvable:$true] %s29
      %s31 = sshll.u32 [#allocation5], 4
      %s32 = int_to_ptr.vmem [resolvable:$true] %s31
      %34 = dma.hbm_to_vmem [thread:$0]  %s30, 64, %s32, [#allocation6]
    $region9: #{tpu_custom_call.1} parent=1 // pred_fallthru
      _
    // Predicated region
    $region10: #{tpu_custom_call.1} parent=1 // pred_check
      _
    $region11: #{tpu_custom_call.1} parent=1 // pred_check_branch
      %36 = sbr.rel (0) target = $region13
    $region12: #{tpu_custom_call.1} parent=1 // pred_region
      %38 = dma.done [#allocation3], 64
    $region13: #{tpu_custom_call.1} parent=1 // pred_fallthru
      _
    // Predicated region
    $region14: #{tpu_custom_call.1} parent=1 // pred_check
      _
    $region15: #{tpu_custom_call.1} parent=1 // pred_check_branch
      %40 = sbr.rel (0) target = $region17
    $region16: #{tpu_custom_call.1} parent=1 // pred_region
      %42 = dma.done [#allocation6], 64
    $region17: #{tpu_custom_call.1} parent=1 // pred_fallthru
      _
    %v43 = vld [vmem:[#allocation2] sm:$0xf]
    %v44 = vld [vmem:[#allocation5] sm:$0xf]
    %vm45 = vcmp.eq.f32.partialorder %v44, 1.0
    %vm46 = vcmp.lt.f32.partialorder %v44, 1.0
    %v47 = vadd.f32 %v43, 1e-08
    %v48 = vlog2.pop %v47
    %v49 = vmul.f32 %v48, 0.6931472
    %v50 = vsub.f32 1.0, %v43
    %v51 = vadd.f32 %v50, 1e-08
    %v52 = vlog2.pop %v51
    %v53 = vmul.f32 %v52, 0.6931472
    %v54 = vsub.f32 1.0, %v44
    %v55 = vmul.f32 %v54, %v54
    %v56 = vmul.f32 %v55, %v55
    %v57 = vmul.f32 %v53, %v56
    %v58 = vsel %vm46, %v57, 0.0
    %v59 = vsel %vm45, %v49, %v58
    %v60 = vsel %vm45, 1.0, 0.0
    %vm61 = vcmask 1043456
    %v62 = vsel %vm61, %v60, 0.0
    %v63 = vrot.slane %v62, 4
    %v64 = vadd.f32 %v62, %v63
    %v65 = vrot.slane %v64, 2
    %v66 = vadd.f32 %v64, %v65
    %v67 = vrot.slane %v66, 1
    %v68 = vadd.f32 %v66, %v67
    %69 = vst [vmem:[#allocation7] sm:$0x1] %v68
    %v70 = vsel %vm61, %v59, 0.0
    %v71 = vrot.slane %v70, 4
    %v72 = vadd.f32 %v70, %v71
    %v73 = vrot.slane %v72, 2
    %v74 = vadd.f32 %v72, %v73
    %v75 = vrot.slane %v74, 1
    %v76 = vadd.f32 %v74, %v75
    %77 = vst [vmem:[#allocation8] sm:$0x1] %v76
    // Predicated region
    $region18: #{tpu_custom_call.1} parent=1 // pred_check
      _
    $region19: #{tpu_custom_call.1} parent=1 // pred_check_branch
      %79 = sbr.rel (0) target = $region21
    $region20: #{tpu_custom_call.1} parent=1 // pred_region
      %81 = vsyncadd [#allocation4], 0
      %s83 = sshll.u32 [#allocation7], 4
      %s84 = int_to_ptr.vmem [resolvable:$true] %s83
      %s85 = sshll.u32 %s2, 4
      %s86 = int_to_ptr.hbm [resolvable:$true] %s85
      %88 = dma.vmem_to_hbm [thread:$0]  %s84, 16, %s86, [#allocation4]
    $region21: #{tpu_custom_call.1} parent=1 // pred_fallthru
      _
    // Predicated region
    $region22: #{tpu_custom_call.1} parent=1 // pred_check
      _
    $region23: #{tpu_custom_call.1} parent=1 // pred_check_branch
      %90 = sbr.rel (0) target = $region25
    $region24: #{tpu_custom_call.1} parent=1 // pred_region
      %92 = vsyncadd [#allocation9], 0
      %s94 = sshll.u32 [#allocation8], 4
      %s95 = int_to_ptr.vmem [resolvable:$true] %s94
      %s96 = sshll.u32 %s3, 4
      %s97 = int_to_ptr.hbm [resolvable:$true] %s96
      %99 = dma.vmem_to_hbm [thread:$0]  %s95, 16, %s97, [#allocation9]
    $region25: #{tpu_custom_call.1} parent=1 // pred_fallthru
      _
    // Predicated region
    $region26: #{tpu_custom_call.1} parent=1 // pred_check
      _
    $region27: #{tpu_custom_call.1} parent=1 // pred_check_branch
      %101 = sbr.rel (0) target = $region29
    $region28: #{tpu_custom_call.1} parent=1 // pred_region
      %103 = dma.done [#allocation4], 16
    $region29: #{tpu_custom_call.1} parent=1 // pred_fallthru
      _
    // Predicated region
    $region30: #{tpu_custom_call.1} parent=1 // pred_check
      _
    $region31: #{tpu_custom_call.1} parent=1 // pred_check_branch
      %105 = sbr.rel (0) target = $region33
    $region32: #{tpu_custom_call.1} parent=1 // pred_region
      %107 = dma.done [#allocation9], 16
    $region33: #{tpu_custom_call.1} parent=1 // pred_fallthru
      _
    %108 = vsyncpa [#allocation3], 1
    %109 = vsyncpa [#allocation6], 1
    %110 = vsyncpa [#allocation4], 1
    %111 = vsyncpa [#allocation9], 1

</llo_original>
